<compile_context>
chip_gen: v6e
topology: v6e:2x2x1
jax: 0.10.0
libtpu: 0.0.40
codegen_flags: <defaults>
</compile_context>

<pallas_src>
import jax
import jax.numpy as jnp
import numpy as np
from jax.experimental import pallas as pl
from jax.experimental.pallas import tpu as pltpu


def _round_up(x, m):
    return -(-x // m) * m


def _make_kernel(l_valid):
    """Kernel factory; l_valid is the original (unpadded) sequence length."""

    def kernel(maxlen_ref, bias_ref,                              # SMEM scalars
               lengths_ref, metaphor_ref, inputs_ref, w_ref,      # VMEM inputs
               repr_ref, scores_ref, weighted_ref):               # VMEM outputs
        m = metaphor_ref[...]                      # (Bt, Lp, A)
        x = inputs_ref[...]                        # (Bt, Lp, Hp)
        w = w_ref[...]                             # (1, A)
        bias = bias_ref[0, 0]
        max_len = maxlen_ref[0, 0]

        # Linear(A, 1) + tanh: dot product over A on the VPU, lane-dense (Bt, Lp) result.
        # (Dropout(0.0) is the identity.)
        raw = jnp.sum(m * w[None, :, :], axis=-1) + bias          # (Bt, Lp)
        s = jnp.tanh(raw)                                         # bounded to [-1, 1]

        # get_mask semantics: only rows with length < max(lengths) zero their tail
        # positions; positions beyond the original L (layout padding) are always masked.
        lengths = lengths_ref[...]                                # (Bt, 1) int32
        pos = jax.lax.broadcasted_iota(jnp.int32, s.shape, 1)     # (Bt, Lp)
        keep = jnp.logical_or(lengths >= max_len, pos < lengths)
        if l_valid < s.shape[1]:
            keep = jnp.logical_and(keep, pos < l_valid)

        # softmax -> mask -> renormalize collapses to (e*keep)/sum(e*keep).
        # tanh-bounded logits => no max-subtraction needed (exp cannot overflow).
        e = jnp.exp(s) * keep.astype(s.dtype)                     # (Bt, Lp)
        denom = jnp.sum(e, axis=1, keepdims=True)                 # (Bt, 1)
        norm = e * pl.reciprocal(denom, approx=True)              # (Bt, Lp)

        scores_ref[...] = norm                                    # lane-dense store
        w_out = x * norm[:, :, None]                              # (Bt, Lp, Hp)
        weighted_ref[...] = w_out
        repr_ref[...] = jnp.sum(w_out, axis=1)                    # (Bt, Hp)

    return kernel


def _vmem_budget():
    """Generation-aware (limit, double-buffered working-set budget) in bytes."""
    try:
        cap = pltpu.get_tpu_info().vmem_capacity_bytes            # 128 MiB v5e/v6e, 64 MiB v7x
    except Exception:
        cap = 64 * 1024 * 1024                                    # conservative fallback
    limit = min(int(cap * 0.75), 96 * 1024 * 1024)                # 96 MiB v5e/v6e, 48 MiB v7x
    budget = int(limit * 0.45)                                    # leave pipeline headroom
    return limit, budget


def _choose_block_b(B, Lp, Hp, A, budget, max_block=2048):
    """Largest batch tile whose *padded*, double-buffered VMEM footprint fits the budget."""
    a_lanes = _round_up(A, 128)
    per_row = 4 * (Lp * a_lanes          # metaphor block (lane-padded A)
                   + 2 * Lp * Hp         # inputs + weighted blocks
                   + Lp                  # scores block
                   + Hp                  # representations block
                   + 128)                # lengths (Bt, 1) tile lane padding
    fit = max(1, budget // (2 * per_row))                         # x2: double-buffered
    bt = int(min(B, max_block, fit))
    if bt < B:
        bt = max(8, (bt // 8) * 8)       # keep (Bt, .) 2D blocks (8,128)-legal
    return bt


def self_attention_metaphors(inputs, metaphor, lengths, w, bias, block_b=None):
    """w: PyTorch Linear(A, 1) weight, shape (1, A); bias: shape (1,)."""
    B, L, H = inputs.shape
    _, _, A = metaphor.shape

    # TODO(synk): inputs/weighted could be streamed as bf16 (compute stays f32) to halve
    # HBM traffic on this bandwidth-bound op if callers accept bf16 I/O.
    inputs = inputs.astype(jnp.float32)
    metaphor = metaphor.astype(jnp.float32)
    lengths = lengths.astype(jnp.int32)
    w_row = w.reshape(1, A).astype(jnp.float32)
    bias_s = bias.reshape(1, 1).astype(jnp.float32)
    maxlen = jnp.max(lengths).reshape(1, 1).astype(jnp.int32)     # before any batch padding

    # Lane-dense layout: pad L and H up to multiples of 128 (no-op when already aligned)
    # so output block stores are unmasked and the softmax path uses full lane width.
    Lp = _round_up(L, 128)
    Hp = _round_up(H, 128)
    if Lp != L or Hp != H:
        inputs = jnp.pad(inputs, ((0, 0), (0, Lp - L), (0, Hp - H)))
        metaphor = jnp.pad(metaphor, ((0, 0), (0, Lp - L), (0, 0)))

    vmem_limit, vmem_budget = _vmem_budget()

    if block_b is None:
        Bt = _choose_block_b(B, Lp, Hp, A, vmem_budget)
        # Keep >= 2 grid blocks when possible: splits the "parallel" batch axis across
        # both v7x TensorCores and gives the pipeline something to overlap on all chips.
        if B > 8:
            Bt = min(Bt, max(8, ((-(-B // 2)) // 8) * 8))
    else:
        Bt = int(block_b)
        if Bt < B:
            Bt = max(8, (Bt // 8) * 8)   # user-supplied block_b robustness

    n_blocks = -(-B // Bt)
    Bp = n_blocks * Bt
    pad_b = Bp - B
    if pad_b:
        inputs = jnp.pad(inputs, ((0, pad_b), (0, 0), (0, 0)))
        metaphor = jnp.pad(metaphor, ((0, pad_b), (0, 0), (0, 0)))
        # Padded rows keep the first L positions so their score sum is never zero.
        lengths = jnp.concatenate([lengths, jnp.full((pad_b,), L, jnp.int32)])
    lengths2 = lengths.reshape(Bp, 1)

    repr_o, scores_o, weighted_o = pl.pallas_call(
        _make_kernel(L),
        grid=(n_blocks,),
        in_specs=[
            pl.BlockSpec(memory_space=pltpu.MemorySpace.SMEM),            # max(lengths)
            pl.BlockSpec(memory_space=pltpu.MemorySpace.SMEM),            # bias
            pl.BlockSpec((Bt, 1), lambda b: (b, 0)),                      # lengths
            pl.BlockSpec((Bt, Lp, A), lambda b: (b, 0, 0)),               # metaphor
            pl.BlockSpec((Bt, Lp, Hp), lambda b: (b, 0, 0)),              # inputs
            pl.BlockSpec((1, A), lambda b: (0, 0)),                       # W row
        ],
        out_specs=[
            pl.BlockSpec((Bt, Hp), lambda b: (b, 0)),                     # representations
            pl.BlockSpec((Bt, Lp), lambda b: (b, 0)),                     # scores
            pl.BlockSpec((Bt, Lp, Hp), lambda b: (b, 0, 0)),              # weighted
        ],
        out_shape=(
            jax.ShapeDtypeStruct((Bp, Hp), jnp.float32),
            jax.ShapeDtypeStruct((Bp, Lp), jnp.float32),
            jax.ShapeDtypeStruct((Bp, Lp, Hp), jnp.float32),
        ),
        compiler_params=pltpu.CompilerParams(
            dimension_semantics=("parallel",),
            vmem_limit_bytes=vmem_limit),
    )(maxlen, bias_s, lengths2, metaphor, inputs, w_row)

    return repr_o[:B, :H], scores_o[:B, :L], weighted_o[:B, :L, :H]


def _reference(inputs, metaphor, lengths, w, bias):
    """Pure-JAX mirror of the PyTorch forward (for verification)."""
    s = jnp.tanh(jnp.einsum("bla,a->bl", metaphor, w.reshape(-1)) + bias[0])
    s = jax.nn.softmax(s, axis=-1)
    L = metaphor.shape[1]
    max_len = jnp.max(lengths)
    pos = jnp.arange(L)[None, :]
    keep = jnp.where(lengths[:, None] < max_len, pos < lengths[:, None], True)
    masked = s * keep.astype(s.dtype)
    norm = masked / jnp.sum(masked, axis=-1, keepdims=True)
    weighted = inputs * norm[..., None]
    return weighted.sum(1), norm, weighted


if __name__ == "__main__":
    B, L, A, H = 2, 8, 32, 32
    key = jax.random.PRNGKey(0)
    k1, k2, k3, k4 = jax.random.split(key, 4)

    metaphor = jax.random.normal(k1, (B, L, A), dtype=jnp.float32)
    inputs = jax.random.normal(k2, (B, L, H), dtype=jnp.float32)
    lengths = jnp.array([5, 7], dtype=jnp.int32)

    # Deterministic Linear(attention_size, 1) parameters (PyTorch weight layout (out, in)).
    w = 0.1 * jax.random.normal(k3, (1, A), dtype=jnp.float32)
    bias = 0.1 * jax.random.normal(k4, (1,), dtype=jnp.float32)

    rep, scores, weighted = self_attention_metaphors(inputs, metaphor, lengths, w, bias)
    jax.block_until_ready((rep, scores, weighted))

    rep_r, scores_r, weighted_r = _reference(inputs, metaphor, lengths, w, bias)
    # Tolerance accounts for the EUP approximate reciprocal in the renormalization.
    np.testing.assert_allclose(np.asarray(rep), np.asarray(rep_r), rtol=3e-3, atol=3e-3)
    np.testing.assert_allclose(np.asarray(scores), np.asarray(scores_r), rtol=3e-3, atol=3e-3)
    np.testing.assert_allclose(np.asarray(weighted), np.asarray(weighted_r), rtol=3e-3, atol=3e-3)

    print("KERNEL_OK")
</pallas_src>

<mosaic_0001>
module attributes {stable_mosaic.version = 11 : i64} {
  func.func @kernel(%arg0: i32, %arg1: memref<1x1xi32, #tpu.memory_space<smem>>, %arg2: memref<1x1xf32, #tpu.memory_space<smem>>, %arg3: memref<2x1xi32, #tpu.memory_space<vmem>>, %arg4: memref<2x128x32xf32, #tpu.memory_space<vmem>>, %arg5: memref<2x128x128xf32, #tpu.memory_space<vmem>>, %arg6: memref<1x32xf32, #tpu.memory_space<vmem>>, %arg7: memref<2x128xf32, #tpu.memory_space<vmem>>, %arg8: memref<2x128xf32, #tpu.memory_space<vmem>>, %arg9: memref<2x128x128xf32, #tpu.memory_space<vmem>>) attributes {dimension_semantics = [#tpu.dimension_semantics<parallel>], iteration_bounds = array<i64: 1>, scalar_prefetch = 0 : i64, scratch_operands = 0 : i64, tpu.core_type = #tpu.core_type<tc>, window_params = [{transform_indices = @transform_0, window_bounds = array<i64: 1, 1>}, {transform_indices = @transform_1, window_bounds = array<i64: 1, 1>}, {transform_indices = @transform_2, window_bounds = array<i64: 2, 1>}, {transform_indices = @transform_3, window_bounds = array<i64: 2, 128, 32>}, {transform_indices = @transform_4, window_bounds = array<i64: 2, 128, 128>}, {pipeline_mode = #tpu.pipeline_mode<synchronous>, transform_indices = @transform_5, window_bounds = array<i64: 1, 32>}, {transform_indices = @transform_6, window_bounds = array<i64: 2, 128>}, {transform_indices = @transform_7, window_bounds = array<i64: 2, 128>}, {transform_indices = @transform_8, window_bounds = array<i64: 2, 128, 128>}]} {
    %c0 = arith.constant 0 : index
    %c0_0 = arith.constant 0 : index
    %c0_1 = arith.constant 0 : index
    %0 = vector.load %arg4[%c0, %c0_0, %c0_1] : memref<2x128x32xf32, #tpu.memory_space<vmem>>, vector<2x128x32xf32>
    %c0_2 = arith.constant 0 : index
    %c0_3 = arith.constant 0 : index
    %c0_4 = arith.constant 0 : index
    %1 = vector.load %arg5[%c0_2, %c0_3, %c0_4] : memref<2x128x128xf32, #tpu.memory_space<vmem>>, vector<2x128x128xf32>
    %c0_5 = arith.constant 0 : index
    %c0_6 = arith.constant 0 : index
    %2 = vector.load %arg6[%c0_5, %c0_6] : memref<1x32xf32, #tpu.memory_space<vmem>>, vector<1x32xf32>
    %c0_7 = arith.constant 0 : index
    %c0_8 = arith.constant 0 : index
    %3 = memref.load %arg2[%c0_7, %c0_8] : memref<1x1xf32, #tpu.memory_space<smem>>
    %c0_9 = arith.constant 0 : index
    %c0_10 = arith.constant 0 : index
    %4 = memref.load %arg1[%c0_9, %c0_10] : memref<1x1xi32, #tpu.memory_space<smem>>
    %5 = vector.shape_cast %2 : vector<1x32xf32> to vector<1x1x32xf32>
    %6 = vector.broadcast %5 : vector<1x1x32xf32> to vector<2x128x32xf32>
    %7 = arith.mulf %0, %6 : vector<2x128x32xf32>
    %cst = arith.constant dense<0.000000e+00> : vector<2x128xf32>
    %8 = vector.multi_reduction <add>, %7, %cst [2] : vector<2x128x32xf32> to vector<2x128xf32>
    %9 = vector.broadcast %3 : f32 to vector<2x128xf32>
    %10 = arith.addf %8, %9 : vector<2x128xf32>
    %11 = math.tanh %10 : vector<2x128xf32>
    %c0_11 = arith.constant 0 : index
    %c0_12 = arith.constant 0 : index
    %12 = vector.load %arg3[%c0_11, %c0_12] : memref<2x1xi32, #tpu.memory_space<vmem>>, vector<2x1xi32>
    %13 = tpu.iota {dimensions = array<i32: 1>} : vector<2x128xi32>
    %14 = vector.broadcast %4 : i32 to vector<2x1xi32>
    %15 = arith.cmpi sge, %12, %14 : vector<2x1xi32>
    %16 = vector.broadcast %12 : vector<2x1xi32> to vector<2x128xi32>
    %17 = arith.cmpi slt, %13, %16 : vector<2x128xi32>
    %18 = vector.broadcast %15 : vector<2x1xi1> to vector<2x128xi1>
    %19 = arith.ori %18, %17 : vector<2x128xi1>
    %c8_i32 = arith.constant 8 : i32
    %20 = vector.broadcast %c8_i32 : i32 to vector<2x128xi32>
    %21 = arith.cmpi slt, %13, %20 : vector<2x128xi32>
    %22 = arith.andi %19, %21 : vector<2x128xi1>
    %23 = math.exp %11 : vector<2x128xf32>
    %24 = arith.extui %22 : vector<2x128xi1> to vector<2x128xi32>
    %25 = arith.sitofp %24 : vector<2x128xi32> to vector<2x128xf32>
    %26 = arith.mulf %23, %25 : vector<2x128xf32>
    %cst_13 = arith.constant dense<0.000000e+00> : vector<2xf32>
    %27 = vector.multi_reduction <add>, %26, %cst_13 [1] : vector<2x128xf32> to vector<2xf32>
    %28 = vector.shape_cast %27 : vector<2xf32> to vector<2x1xf32>
    %29 = tpu.reciprocal %28 {approx = true} : vector<2x1xf32> -> vector<2x1xf32>
    %30 = vector.broadcast %29 : vector<2x1xf32> to vector<2x128xf32>
    %31 = arith.mulf %26, %30 : vector<2x128xf32>
    %c0_14 = arith.constant 0 : index
    %c0_15 = arith.constant 0 : index
    %32 = vector.load %arg8[%c0_14, %c0_15] : memref<2x128xf32, #tpu.memory_space<vmem>>, vector<2x128xf32>
    tpu.vector_store %arg8[%c0_14, %c0_15], %31 {strides = array<i32>} : memref<2x128xf32, #tpu.memory_space<vmem>>, vector<2x128xf32>,
    %33 = vector.shape_cast %31 : vector<2x128xf32> to vector<2x128x1xf32>
    %34 = vector.broadcast %33 : vector<2x128x1xf32> to vector<2x128x128xf32>
    %35 = arith.mulf %1, %34 : vector<2x128x128xf32>
    %c0_16 = arith.constant 0 : index
    %c0_17 = arith.constant 0 : index
    %c0_18 = arith.constant 0 : index
    %36 = vector.load %arg9[%c0_16, %c0_17, %c0_18] : memref<2x128x128xf32, #tpu.memory_space<vmem>>, vector<2x128x128xf32>
    tpu.vector_store %arg9[%c0_16, %c0_17, %c0_18], %35 {strides = array<i32>} : memref<2x128x128xf32, #tpu.memory_space<vmem>>, vector<2x128x128xf32>,
    %cst_19 = arith.constant dense<0.000000e+00> : vector<2x128xf32>
    %37 = vector.multi_reduction <add>, %35, %cst_19 [1] : vector<2x128x128xf32> to vector<2x128xf32>
    %c0_20 = arith.constant 0 : index
    %c0_21 = arith.constant 0 : index
    %38 = vector.load %arg7[%c0_20, %c0_21] : memref<2x128xf32, #tpu.memory_space<vmem>>, vector<2x128xf32>
    tpu.vector_store %arg7[%c0_20, %c0_21], %37 {strides = array<i32>} : memref<2x128xf32, #tpu.memory_space<vmem>>, vector<2x128xf32>,
    return
  }
  func.func @transform_0(%arg0: i32) -> (i32, i32) {
    %c0_i32 = arith.constant 0 : i32
    %c0_i32_0 = arith.constant 0 : i32
    %c0_i32_1 = arith.constant 0 : i32
    return %c0_i32, %c0_i32_0 : i32, i32
  }
  func.func @transform_1(%arg0: i32) -> (i32, i32) {
    %c0_i32 = arith.constant 0 : i32
    %c0_i32_0 = arith.constant 0 : i32
    %c0_i32_1 = arith.constant 0 : i32
    return %c0_i32, %c0_i32_0 : i32, i32
  }
  func.func @transform_2(%arg0: i32) -> (i32, i32) {
    %c0_i32 = arith.constant 0 : i32
    %c0_i32_0 = arith.constant 0 : i32
    return %arg0, %c0_i32 : i32, i32
  }
  func.func @transform_3(%arg0: i32) -> (i32, i32, i32) {
    %c0_i32 = arith.constant 0 : i32
    %c0_i32_0 = arith.constant 0 : i32
    %c0_i32_1 = arith.constant 0 : i32
    return %arg0, %c0_i32, %c0_i32_0 : i32, i32, i32
  }
  func.func @transform_4(%arg0: i32) -> (i32, i32, i32) {
    %c0_i32 = arith.constant 0 : i32
    %c0_i32_0 = arith.constant 0 : i32
    %c0_i32_1 = arith.constant 0 : i32
    return %arg0, %c0_i32, %c0_i32_0 : i32, i32, i32
  }
  func.func @transform_5(%arg0: i32) -> (i32, i32) {
    %c0_i32 = arith.constant 0 : i32
    %c0_i32_0 = arith.constant 0 : i32
    %c0_i32_1 = arith.constant 0 : i32
    return %c0_i32, %c0_i32_0 : i32, i32
  }
  func.func @transform_6(%arg0: i32) -> (i32, i32) {
    %c0_i32 = arith.constant 0 : i32
    %c0_i32_0 = arith.constant 0 : i32
    return %arg0, %c0_i32 : i32, i32
  }
  func.func @transform_7(%arg0: i32) -> (i32, i32) {
    %c0_i32 = arith.constant 0 : i32
    %c0_i32_0 = arith.constant 0 : i32
    return %arg0, %c0_i32 : i32, i32
  }
  func.func @transform_8(%arg0: i32) -> (i32, i32, i32) {
    %c0_i32 = arith.constant 0 : i32
    %c0_i32_0 = arith.constant 0 : i32
    %c0_i32_1 = arith.constant 0 : i32
    return %arg0, %c0_i32, %c0_i32_0 : i32, i32, i32
  }
}

</mosaic_0001>

<llo_original>
// kernel: tpu_custom_call.1
$region0: #{tpu_custom_call.1}
  #allocation0 [shape = 'u32[]', space=smem, size = 0x4, offset = 0x4, fixed_abs, tag = 'smem constant byte address 0x4 - core index']
  #allocation1 [shape = 'u32[144,128]{1,0:T(1,128)}', space=vmem, size = 0x12000, scoped, tag = 'internal scratch']
  #allocation2 [shape = 's32[1,1]{1,0:T(1,128)S(6)}', space=smem, size = 0x200, scoped, tag = 'scoped memory for tpu_custom_call.1']
  #allocation3 [shape = 'f32[1,1]{1,0:T(1,128)S(6)}', space=smem, size = 0x200, scoped, tag = 'scoped memory for tpu_custom_call.1']
  %s0 = inlined_call_operand.<no memory space> [shape: s32[1,1], index: 0, kind: input, shape index: {}]
  %s1 = inlined_call_operand.<no memory space> [shape: f32[1,1], index: 1, kind: input, shape index: {}]
  %s2 = inlined_call_operand.vmem [shape: s32[2,1], index: 2, kind: input, shape index: {}]
  %s3 = inlined_call_operand.vmem [shape: f32[2,128,32], index: 3, kind: input, shape index: {}]
  %s4 = inlined_call_operand.vmem [shape: f32[2,128,128], index: 4, kind: input, shape index: {}]
  %s5 = inlined_call_operand.vmem [shape: f32[1,32], index: 5, kind: input, shape index: {}]
  %s6 = inlined_call_operand.hbm [shape: f32[2,128], index: 6, kind: output, shape index: {0}]
  %s7 = inlined_call_operand.hbm [shape: f32[2,128], index: 7, kind: output, shape index: {1}]
  %s8 = inlined_call_operand.hbm [shape: f32[2,128,128], index: 8, kind: output, shape index: {2}]
  %9 = xla_tuple %s6, %s7, %s8
  %s10 = sld [smem:[#allocation0]]
  $region50: #{tpu_custom_call.1} parent=0
    _
  %s12 = ssub.s32 1, %s10
  %s13 = scalar_select 0, %s12, %s10
  %14 = sst [smem:[#allocation2]] %s0
  %15 = sst [smem:[#allocation3]] %s1
  $region1: #{tpu_custom_call.1} parent=0
    #allocation4 [shape = 'u8[1024]{0}', space=vmem, size = 0x400, scoped, tag = 'output window, operand 0, single buffered']
    #allocation5 [shape = 's32[1]{0}', space=sflag, size = 0x4, scoped, tag = 'scoped memory for tpu_custom_call.1']
    #allocation6 [shape = 'u8[1024]{0}', space=vmem, size = 0x400, scoped, tag = 'output window, operand 1, single buffered']
    #allocation7 [shape = 's32[1]{0}', space=sflag, size = 0x4, scoped, tag = 'scoped memory for tpu_custom_call.1']
    #allocation8 [shape = 'u8[131072]{0}', space=vmem, size = 0x20000, scoped, tag = 'output window, operand 2, single buffered']
    %16 = vsyncpa [#allocation5], 0
    %17 = vsyncpa [#allocation7], 0
    // Predicated region
    $region2: #{tpu_custom_call.1} parent=1 // pred_check
      _
    $region3: #{tpu_custom_call.1} parent=1 // pred_check_branch
      %19 = sbr.rel (0) target = $region5
    $region4: #{tpu_custom_call.1} parent=1 // pred_region
      _
    $region5: #{tpu_custom_call.1} parent=1 // pred_fallthru
      _
    // Predicated region
    $region6: #{tpu_custom_call.1} parent=1 // pred_check
      _
    $region7: #{tpu_custom_call.1} parent=1 // pred_check_branch
      %21 = sbr.rel (0) target = $region9
    $region8: #{tpu_custom_call.1} parent=1 // pred_region
      _
    $region9: #{tpu_custom_call.1} parent=1 // pred_fallthru
      _
    // Predicated region
    $region10: #{tpu_custom_call.1} parent=1 // pred_check
      _
    $region11: #{tpu_custom_call.1} parent=1 // pred_check_branch
      %23 = sbr.rel (0) target = $region13
    $region12: #{tpu_custom_call.1} parent=1 // pred_region
      _
    $region13: #{tpu_custom_call.1} parent=1 // pred_fallthru
      _
    // Predicated region
    $region14: #{tpu_custom_call.1} parent=1 // pred_check
      _
    $region15: #{tpu_custom_call.1} parent=1 // pred_check_branch
      %25 = sbr.rel (0) target = $region17
    $region16: #{tpu_custom_call.1} parent=1 // pred_region
      _
    $region17: #{tpu_custom_call.1} parent=1 // pred_fallthru
      _
    // Predicated region
    $region18: #{tpu_custom_call.1} parent=1 // pred_check
      _
    $region19: #{tpu_custom_call.1} parent=1 // pred_check_branch
      %27 = sbr.rel (0) target = $region21
    $region20: #{tpu_custom_call.1} parent=1 // pred_region
      _
    $region21: #{tpu_custom_call.1} parent=1 // pred_fallthru
      _
    // Predicated region
    $region22: #{tpu_custom_call.1} parent=1 // pred_check
      _
    $region23: #{tpu_custom_call.1} parent=1 // pred_check_branch
      %29 = sbr.rel (0) target = $region25
    $region24: #{tpu_custom_call.1} parent=1 // pred_region
      _
    $region25: #{tpu_custom_call.1} parent=1 // pred_fallthru
      _
    %v30 = vld [vmem:[%s3] sm:$0xff]
    %v31 = vld [vmem:[%s3 + $0x8] sm:$0xff]
    %v32 = vld [vmem:[%s3 + $0x10] sm:$0xff]
    %v33 = vld [vmem:[%s3 + $0x18] sm:$0xff]
    %v34 = vld [vmem:[%s3 + $0x20] sm:$0xff]
    %v35 = vld [vmem:[%s3 + $0x28] sm:$0xff]
    %v36 = vld [vmem:[%s3 + $0x30] sm:$0xff]
    %v37 = vld [vmem:[%s3 + $0x38] sm:$0xff]
    %v38 = vld [vmem:[%s3 + $0x40] sm:$0xff]
    %v39 = vld [vmem:[%s3 + $0x48] sm:$0xff]
    %v40 = vld [vmem:[%s3 + $0x50] sm:$0xff]
    %v41 = vld [vmem:[%s3 + $0x58] sm:$0xff]
    %v42 = vld [vmem:[%s3 + $0x60] sm:$0xff]
    %v43 = vld [vmem:[%s3 + $0x68] sm:$0xff]
    %v44 = vld [vmem:[%s3 + $0x70] sm:$0xff]
    %v45 = vld [vmem:[%s3 + $0x78] sm:$0xff]
    %v46 = vld [vmem:[%s3 + $0x80] sm:$0xff]
    %v47 = vld [vmem:[%s3 + $0x88] sm:$0xff]
    %v48 = vld [vmem:[%s3 + $0x90] sm:$0xff]
    %v49 = vld [vmem:[%s3 + $0x98] sm:$0xff]
    %v50 = vld [vmem:[%s3 + $0xa0] sm:$0xff]
    %v51 = vld [vmem:[%s3 + $0xa8] sm:$0xff]
    %v52 = vld [vmem:[%s3 + $0xb0] sm:$0xff]
    %v53 = vld [vmem:[%s3 + $0xb8] sm:$0xff]
    %v54 = vld [vmem:[%s3 + $0xc0] sm:$0xff]
    %v55 = vld [vmem:[%s3 + $0xc8] sm:$0xff]
    %v56 = vld [vmem:[%s3 + $0xd0] sm:$0xff]
    %v57 = vld [vmem:[%s3 + $0xd8] sm:$0xff]
    %v58 = vld [vmem:[%s3 + $0xe0] sm:$0xff]
    %v59 = vld [vmem:[%s3 + $0xe8] sm:$0xff]
    %v60 = vld [vmem:[%s3 + $0xf0] sm:$0xff]
    %v61 = vld [vmem:[%s3 + $0xf8] sm:$0xff]
    %v62 = vld [vmem:[%s4] sm:$0xff]
    %v63 = vld [vmem:[%s4 + $0x8] sm:$0xff]
    %v64 = vld [vmem:[%s4 + $0x10] sm:$0xff]
    %v65 = vld [vmem:[%s4 + $0x18] sm:$0xff]
    %v66 = vld [vmem:[%s4 + $0x20] sm:$0xff]
    %v67 = vld [vmem:[%s4 + $0x28] sm:$0xff]
    %v68 = vld [vmem:[%s4 + $0x30] sm:$0xff]
    %v69 = vld [vmem:[%s4 + $0x38] sm:$0xff]
    %v70 = vld [vmem:[%s4 + $0x40] sm:$0xff]
    %v71 = vld [vmem:[%s4 + $0x48] sm:$0xff]
    %v72 = vld [vmem:[%s4 + $0x50] sm:$0xff]
    %v73 = vld [vmem:[%s4 + $0x58] sm:$0xff]
    %v74 = vld [vmem:[%s4 + $0x60] sm:$0xff]
    %v75 = vld [vmem:[%s4 + $0x68] sm:$0xff]
    %v76 = vld [vmem:[%s4 + $0x70] sm:$0xff]
    %v77 = vld [vmem:[%s4 + $0x78] sm:$0xff]
    %v78 = vld [vmem:[%s4 + $0x80] sm:$0xff]
    %v79 = vld [vmem:[%s4 + $0x88] sm:$0xff]
    %v80 = vld [vmem:[%s4 + $0x90] sm:$0xff]
    %v81 = vld [vmem:[%s4 + $0x98] sm:$0xff]
    %v82 = vld [vmem:[%s4 + $0xa0] sm:$0xff]
    %v83 = vld [vmem:[%s4 + $0xa8] sm:$0xff]
    %v84 = vld [vmem:[%s4 + $0xb0] sm:$0xff]
    %v85 = vld [vmem:[%s4 + $0xb8] sm:$0xff]
    %v86 = vld [vmem:[%s4 + $0xc0] sm:$0xff]
    %v87 = vld [vmem:[%s4 + $0xc8] sm:$0xff]
    %v88 = vld [vmem:[%s4 + $0xd0] sm:$0xff]
    %v89 = vld [vmem:[%s4 + $0xd8] sm:$0xff]
    %v90 = vld [vmem:[%s4 + $0xe0] sm:$0xff]
    %v91 = vld [vmem:[%s4 + $0xe8] sm:$0xff]
    %v92 = vld [vmem:[%s4 + $0xf0] sm:$0xff]
    %v93 = vld [vmem:[%s4 + $0xf8] sm:$0xff]
    %v94 = vld [vmem:[%s5] sm:$0x1]
    %s95 = sld [smem:[#allocation3]]
    %s96 = sld [smem:[#allocation2]]
    %v98 = vlaneseq
    %v99 = vshrl.u32 %v98, 7
    %v100 = vsub.s32 0, %v99
    %v101 = vrot.slane %v94, %v100
    %v103 = vmul.f32 %v30, %v101
    %v104 = vmul.f32 %v31, %v101
    %v105 = vmul.f32 %v32, %v101
    %v106 = vmul.f32 %v33, %v101
    %v107 = vmul.f32 %v34, %v101
    %v108 = vmul.f32 %v35, %v101
    %v109 = vmul.f32 %v36, %v101
    %v110 = vmul.f32 %v37, %v101
    %v111 = vmul.f32 %v38, %v101
    %v112 = vmul.f32 %v39, %v101
    %v113 = vmul.f32 %v40, %v101
    %v114 = vmul.f32 %v41, %v101
    %v115 = vmul.f32 %v42, %v101
    %v116 = vmul.f32 %v43, %v101
    %v117 = vmul.f32 %v44, %v101
    %v118 = vmul.f32 %v45, %v101
    %v119 = vmul.f32 %v46, %v101
    %v120 = vmul.f32 %v47, %v101
    %v121 = vmul.f32 %v48, %v101
    %v122 = vmul.f32 %v49, %v101
    %v123 = vmul.f32 %v50, %v101
    %v124 = vmul.f32 %v51, %v101
    %v125 = vmul.f32 %v52, %v101
    %v126 = vmul.f32 %v53, %v101
    %v127 = vmul.f32 %v54, %v101
    %v128 = vmul.f32 %v55, %v101
    %v129 = vmul.f32 %v56, %v101
    %v130 = vmul.f32 %v57, %v101
    %v131 = vmul.f32 %v58, %v101
    %v132 = vmul.f32 %v59, %v101
    %v133 = vmul.f32 %v60, %v101
    %v134 = vmul.f32 %v61, %v101
    %vm135 = vcmask 261120
    %v136 = vsel %vm135, %v103, 0.0
    %137 = vadd.xlane.f32.xlu0 %v136
    %v138 = vpop.xlane.xlu0 %137
    %v139 = vsel %vm135, %v104, 0.0
    %140 = vadd.xlane.f32.xlu0 %v139
    %v141 = vpop.xlane.xlu0 %140
    %v142 = vsel %vm135, %v105, 0.0
    %143 = vadd.xlane.f32.xlu0 %v142
    %v144 = vpop.xlane.xlu0 %143
    %v145 = vsel %vm135, %v106, 0.0
    %146 = vadd.xlane.f32.xlu0 %v145
    %v147 = vpop.xlane.xlu0 %146
    %v148 = vsel %vm135, %v107, 0.0
    %149 = vadd.xlane.f32.xlu0 %v148
    %v150 = vpop.xlane.xlu0 %149
    %v151 = vsel %vm135, %v108, 0.0
    %152 = vadd.xlane.f32.xlu0 %v151
    %v153 = vpop.xlane.xlu0 %152
    %v154 = vsel %vm135, %v109, 0.0
    %155 = vadd.xlane.f32.xlu0 %v154
    %v156 = vpop.xlane.xlu0 %155
    %v157 = vsel %vm135, %v110, 0.0
    %158 = vadd.xlane.f32.xlu0 %v157
    %v159 = vpop.xlane.xlu0 %158
    %v160 = vsel %vm135, %v111, 0.0
    %161 = vadd.xlane.f32.xlu0 %v160
    %v162 = vpop.xlane.xlu0 %161
    %v163 = vsel %vm135, %v112, 0.0
    %164 = vadd.xlane.f32.xlu0 %v163
    %v165 = vpop.xlane.xlu0 %164
    %v166 = vsel %vm135, %v113, 0.0
    %167 = vadd.xlane.f32.xlu0 %v166
    %v168 = vpop.xlane.xlu0 %167
    %v169 = vsel %vm135, %v114, 0.0
    %170 = vadd.xlane.f32.xlu0 %v169
    %v171 = vpop.xlane.xlu0 %170
    %v172 = vsel %vm135, %v115, 0.0
    %173 = vadd.xlane.f32.xlu0 %v172
    %v174 = vpop.xlane.xlu0 %173
    %v175 = vsel %vm135, %v116, 0.0
    %176 = vadd.xlane.f32.xlu0 %v175
    %v177 = vpop.xlane.xlu0 %176
    %v178 = vsel %vm135, %v117, 0.0
    %179 = vadd.xlane.f32.xlu0 %v178
    %v180 = vpop.xlane.xlu0 %179
    %v181 = vsel %vm135, %v118, 0.0
    %182 = vadd.xlane.f32.xlu0 %v181
    %v183 = vpop.xlane.xlu0 %182
    %v184 = vsel %vm135, %v119, 0.0
    %185 = vadd.xlane.f32.xlu0 %v184
    %v186 = vpop.xlane.xlu0 %185
    %v187 = vsel %vm135, %v120, 0.0
    %188 = vadd.xlane.f32.xlu0 %v187
    %v189 = vpop.xlane.xlu0 %188
    %v190 = vsel %vm135, %v121, 0.0
    %191 = vadd.xlane.f32.xlu0 %v190
    %v192 = vpop.xlane.xlu0 %191
    %v193 = vsel %vm135, %v122, 0.0
    %194 = vadd.xlane.f32.xlu0 %v193
    %v195 = vpop.xlane.xlu0 %194
    %v196 = vsel %vm135, %v123, 0.0
    %197 = vadd.xlane.f32.xlu0 %v196
    %v198 = vpop.xlane.xlu0 %197
    %v199 = vsel %vm135, %v124, 0.0
    %200 = vadd.xlane.f32.xlu0 %v199
    %v201 = vpop.xlane.xlu0 %200
    %v202 = vsel %vm135, %v125, 0.0
    %203 = vadd.xlane.f32.xlu0 %v202
    %v204 = vpop.xlane.xlu0 %203
    %v205 = vsel %vm135, %v126, 0.0
    %206 = vadd.xlane.f32.xlu0 %v205
    %v207 = vpop.xlane.xlu0 %206
    %v208 = vsel %vm135, %v127, 0.0
    %209 = vadd.xlane.f32.xlu0 %v208
    %v210 = vpop.xlane.xlu0 %209
    %v211 = vsel %vm135, %v128, 0.0
    %212 = vadd.xlane.f32.xlu0 %v211
    %v213 = vpop.xlane.xlu0 %212
    %v214 = vsel %vm135, %v129, 0.0
    %215 = vadd.xlane.f32.xlu0 %v214
    %v216 = vpop.xlane.xlu0 %215
    %v217 = vsel %vm135, %v130, 0.0
    %218 = vadd.xlane.f32.xlu0 %v217
    %v219 = vpop.xlane.xlu0 %218
    %v220 = vsel %vm135, %v131, 0.0
    %221 = vadd.xlane.f32.xlu0 %v220
    %v222 = vpop.xlane.xlu0 %221
    %v223 = vsel %vm135, %v132, 0.0
    %224 = vadd.xlane.f32.xlu0 %v223
    %v225 = vpop.xlane.xlu0 %224
    %v226 = vsel %vm135, %v133, 0.0
    %227 = vadd.xlane.f32.xlu0 %v226
    %v228 = vpop.xlane.xlu0 %227
    %v229 = vsel %vm135, %v134, 0.0
    %230 = vadd.xlane.f32.xlu0 %v229
    %v231 = vpop.xlane.xlu0 %230
    %v232 = vstv %s95
    %v233 = vadd.f32 %v138, %v232
    %v234 = vadd.f32 %v141, %v232
    %v235 = vadd.f32 %v144, %v232
    %v236 = vadd.f32 %v147, %v232
    %v237 = vadd.f32 %v150, %v232
    %v238 = vadd.f32 %v153, %v232
    %v239 = vadd.f32 %v156, %v232
    %v240 = vadd.f32 %v159, %v232
    %v241 = vadd.f32 %v162, %v232
    %v242 = vadd.f32 %v165, %v232
    %v243 = vadd.f32 %v168, %v232
    %v244 = vadd.f32 %v171, %v232
    %v245 = vadd.f32 %v174, %v232
    %v246 = vadd.f32 %v177, %v232
    %v247 = vadd.f32 %v180, %v232
    %v248 = vadd.f32 %v183, %v232
    %v249 = vadd.f32 %v186, %v232
    %v250 = vadd.f32 %v189, %v232
    %v251 = vadd.f32 %v192, %v232
    %v252 = vadd.f32 %v195, %v232
    %v253 = vadd.f32 %v198, %v232
    %v254 = vadd.f32 %v201, %v232
    %v255 = vadd.f32 %v204, %v232
    %v256 = vadd.f32 %v207, %v232
    %v257 = vadd.f32 %v210, %v232
    %v258 = vadd.f32 %v213, %v232
    %v259 = vadd.f32 %v216, %v232
    %v260 = vadd.f32 %v219, %v232
    %v261 = vadd.f32 %v222, %v232
    %v262 = vadd.f32 %v225, %v232
    %v263 = vadd.f32 %v228, %v232
    %v264 = vadd.f32 %v231, %v232
    %v265 = vtanh.pop %v233
    %v266 = vtanh.pop %v234
    %v267 = vtanh.pop %v235
    %v268 = vtanh.pop %v236
    %v269 = vtanh.pop %v237
    %v270 = vtanh.pop %v238
    %v271 = vtanh.pop %v239
    %v272 = vtanh.pop %v240
    %v273 = vtanh.pop %v241
    %v274 = vtanh.pop %v242
    %v275 = vtanh.pop %v243
    %v276 = vtanh.pop %v244
    %v277 = vtanh.pop %v245
    %v278 = vtanh.pop %v246
    %v279 = vtanh.pop %v247
    %v280 = vtanh.pop %v248
    %v281 = vtanh.pop %v249
    %v282 = vtanh.pop %v250
    %v283 = vtanh.pop %v251
    %v284 = vtanh.pop %v252
    %v285 = vtanh.pop %v253
    %v286 = vtanh.pop %v254
    %v287 = vtanh.pop %v255
    %v288 = vtanh.pop %v256
    %v289 = vtanh.pop %v257
    %v290 = vtanh.pop %v258
    %v291 = vtanh.pop %v259
    %v292 = vtanh.pop %v260
    %v293 = vtanh.pop %v261
    %v294 = vtanh.pop %v262
    %v295 = vtanh.pop %v263
    %v296 = vtanh.pop %v264
    %v297 = vld [vmem:[%s2] sm:$0x3]
    %v298 = vlaneseq
    %v299 = vand.u32 %v298, 127
    %v300 = vstv %s96
    %vm301 = vcmp.ge.s32.totalorder %v297, %v300
    %302 = vset.pattern.permute.xlu0 0
    %303 = vperm.xlu0 %302, %v297
    %v304 = vpop.permute.xlu0 %303
    %vm305 = vcmp.lt.s32.totalorder %v299, %v304
    %v306 = vsel %vm301, 1, 0
    %307 = vset.pattern.permute.xlu0 0
    %308 = vperm.xlu0 %307, %v306
    %v309 = vpop.permute.xlu0 %308
    %vm310 = vcmp.eq.s32.totalorder %v309, 1
    %vm311 = vmor %vm310, %vm305
    %vm312 = vcmp.lt.s32.totalorder %v299, 8
    %vm313 = vmand %vm311, %vm312
    %v314 = vmul.f32 %v265, 1.442695
    %v315 = vpow.pop %v314
    %v316 = vmul.f32 %v266, 1.442695
    %v317 = vpow.pop %v316
    %v318 = vmul.f32 %v267, 1.442695
    %v319 = vpow.pop %v318
    %v320 = vmul.f32 %v268, 1.442695
    %v321 = vpow.pop %v320
    %v322 = vmul.f32 %v269, 1.442695
    %v323 = vpow.pop %v322
    %v324 = vmul.f32 %v270, 1.442695
    %v325 = vpow.pop %v324
    %v326 = vmul.f32 %v271, 1.442695
    %v327 = vpow.pop %v326
    %v328 = vmul.f32 %v272, 1.442695
    %v329 = vpow.pop %v328
    %v330 = vmul.f32 %v273, 1.442695
    %v331 = vpow.pop %v330
    %v332 = vmul.f32 %v274, 1.442695
    %v333 = vpow.pop %v332
    %v334 = vmul.f32 %v275, 1.442695
    %v335 = vpow.pop %v334
    %v336 = vmul.f32 %v276, 1.442695
    %v337 = vpow.pop %v336
    %v338 = vmul.f32 %v277, 1.442695
    %v339 = vpow.pop %v338
    %v340 = vmul.f32 %v278, 1.442695
    %v341 = vpow.pop %v340
    %v342 = vmul.f32 %v279, 1.442695
    %v343 = vpow.pop %v342
    %v344 = vmul.f32 %v280, 1.442695
    %v345 = vpow.pop %v344
    %v346 = vmul.f32 %v281, 1.442695
    %v347 = vpow.pop %v346
    %v348 = vmul.f32 %v282, 1.442695
    %v349 = vpow.pop %v348
    %v350 = vmul.f32 %v283, 1.442695
    %v351 = vpow.pop %v350
    %v352 = vmul.f32 %v284, 1.442695
    %v353 = vpow.pop %v352
    %v354 = vmul.f32 %v285, 1.442695
    %v355 = vpow.pop %v354
    %v356 = vmul.f32 %v286, 1.442695
    %v357 = vpow.pop %v356
    %v358 = vmul.f32 %v287, 1.442695
    %v359 = vpow.pop %v358
    %v360 = vmul.f32 %v288, 1.442695
    %v361 = vpow.pop %v360
    %v362 = vmul.f32 %v289, 1.442695
    %v363 = vpow.pop %v362
    %v364 = vmul.f32 %v290, 1.442695
    %v365 = vpow.pop %v364
    %v366 = vmul.f32 %v291, 1.442695
    %v367 = vpow.pop %v366
    %v368 = vmul.f32 %v292, 1.442695
    %v369 = vpow.pop %v368
    %v370 = vmul.f32 %v293, 1.442695
    %v371 = vpow.pop %v370
    %v372 = vmul.f32 %v294, 1.442695
    %v373 = vpow.pop %v372
    %v374 = vmul.f32 %v295, 1.442695
    %v375 = vpow.pop %v374
    %v376 = vmul.f32 %v296, 1.442695
    %v377 = vpow.pop %v376
    %v378 = vsel %vm313, 1, 0
    %v379 = vcvt.s32.f32 %v378
    %v381 = vlaneseq
    %v382 = vshrl.u32 %v381, 7
    %v383 = vsub.s32 0, %v382
    %v384 = vrot.slane %v379, %v383
    %386 = vbcast.lane.b32.xlu0 %v384, 256
    %v387 = vpop.permute.xlu0 %386
    %s389 = sor.u32 256, 8
    %390 = vbcast.lane.b32.xlu0 %v384, %s389
    %v391 = vpop.permute.xlu0 %390
    %s393 = sor.u32 256, 16
    %394 = vbcast.lane.b32.xlu0 %v384, %s393
    %v395 = vpop.permute.xlu0 %394
    %s397 = sor.u32 256, 24
    %398 = vbcast.lane.b32.xlu0 %v384, %s397
    %v399 = vpop.permute.xlu0 %398
    %s401 = sor.u32 256, 32
    %402 = vbcast.lane.b32.xlu0 %v384, %s401
    %v403 = vpop.permute.xlu0 %402
    %s405 = sor.u32 256, 40
    %406 = vbcast.lane.b32.xlu0 %v384, %s405
    %v407 = vpop.permute.xlu0 %406
    %s409 = sor.u32 256, 48
    %410 = vbcast.lane.b32.xlu0 %v384, %s409
    %v411 = vpop.permute.xlu0 %410
    %s413 = sor.u32 256, 56
    %414 = vbcast.lane.b32.xlu0 %v384, %s413
    %v415 = vpop.permute.xlu0 %414
    %s417 = sor.u32 256, 64
    %418 = vbcast.lane.b32.xlu0 %v384, %s417
    %v419 = vpop.permute.xlu0 %418
    %s421 = sor.u32 256, 72
    %422 = vbcast.lane.b32.xlu0 %v384, %s421
    %v423 = vpop.permute.xlu0 %422
    %s425 = sor.u32 256, 80
    %426 = vbcast.lane.b32.xlu0 %v384, %s425
    %v427 = vpop.permute.xlu0 %426
    %s429 = sor.u32 256, 88
    %430 = vbcast.lane.b32.xlu0 %v384, %s429
    %v431 = vpop.permute.xlu0 %430
    %s433 = sor.u32 256, 96
    %434 = vbcast.lane.b32.xlu0 %v384, %s433
    %v435 = vpop.permute.xlu0 %434
    %s437 = sor.u32 256, 104
    %438 = vbcast.lane.b32.xlu0 %v384, %s437
    %v439 = vpop.permute.xlu0 %438
    %s441 = sor.u32 256, 112
    %442 = vbcast.lane.b32.xlu0 %v384, %s441
    %v443 = vpop.permute.xlu0 %442
    %s445 = sor.u32 256, 120
    %446 = vbcast.lane.b32.xlu0 %v384, %s445
    %v447 = vpop.permute.xlu0 %446
    %v448 = vlaneseq
    %v449 = vshrl.u32 %v448, 7
    %v450 = vsub.s32 1, %v449
    %v451 = vrot.slane %v379, %v450
    %453 = vbcast.lane.b32.xlu0 %v451, 256
    %v454 = vpop.permute.xlu0 %453
    %s456 = sor.u32 256, 8
    %457 = vbcast.lane.b32.xlu0 %v451, %s456
    %v458 = vpop.permute.xlu0 %457
    %s460 = sor.u32 256, 16
    %461 = vbcast.lane.b32.xlu0 %v451, %s460
    %v462 = vpop.permute.xlu0 %461
    %s464 = sor.u32 256, 24
    %465 = vbcast.lane.b32.xlu0 %v451, %s464
    %v466 = vpop.permute.xlu0 %465
    %s468 = sor.u32 256, 32
    %469 = vbcast.lane.b32.xlu0 %v451, %s468
    %v470 = vpop.permute.xlu0 %469
    %s472 = sor.u32 256, 40
    %473 = vbcast.lane.b32.xlu0 %v451, %s472
    %v474 = vpop.permute.xlu0 %473
    %s476 = sor.u32 256, 48
    %477 = vbcast.lane.b32.xlu0 %v451, %s476
    %v478 = vpop.permute.xlu0 %477
    %s480 = sor.u32 256, 56
    %481 = vbcast.lane.b32.xlu0 %v451, %s480
    %v482 = vpop.permute.xlu0 %481
    %s484 = sor.u32 256, 64
    %485 = vbcast.lane.b32.xlu0 %v451, %s484
    %v486 = vpop.permute.xlu0 %485
    %s488 = sor.u32 256, 72
    %489 = vbcast.lane.b32.xlu0 %v451, %s488
    %v490 = vpop.permute.xlu0 %489
    %s492 = sor.u32 256, 80
    %493 = vbcast.lane.b32.xlu0 %v451, %s492
    %v494 = vpop.permute.xlu0 %493
    %s496 = sor.u32 256, 88
    %497 = vbcast.lane.b32.xlu0 %v451, %s496
    %v498 = vpop.permute.xlu0 %497
    %s500 = sor.u32 256, 96
    %501 = vbcast.lane.b32.xlu0 %v451, %s500
    %v502 = vpop.permute.xlu0 %501
    %s504 = sor.u32 256, 104
    %505 = vbcast.lane.b32.xlu0 %v451, %s504
    %v506 = vpop.permute.xlu0 %505
    %s508 = sor.u32 256, 112
    %509 = vbcast.lane.b32.xlu0 %v451, %s508
    %v510 = vpop.permute.xlu0 %509
    %s512 = sor.u32 256, 120
    %513 = vbcast.lane.b32.xlu0 %v451, %s512
    %v514 = vpop.permute.xlu0 %513
    %v547 = vmul.f32 %v315, %v387
    %v548 = vmul.f32 %v317, %v391
    %v549 = vmul.f32 %v319, %v395
    %v550 = vmul.f32 %v321, %v399
    %v551 = vmul.f32 %v323, %v403
    %v552 = vmul.f32 %v325, %v407
    %v553 = vmul.f32 %v327, %v411
    %v554 = vmul.f32 %v329, %v415
    %v555 = vmul.f32 %v331, %v419
    %v556 = vmul.f32 %v333, %v423
    %v557 = vmul.f32 %v335, %v427
    %v558 = vmul.f32 %v337, %v431
    %v559 = vmul.f32 %v339, %v435
    %v560 = vmul.f32 %v341, %v439
    %v561 = vmul.f32 %v343, %v443
    %v562 = vmul.f32 %v345, %v447
    %v563 = vmul.f32 %v347, %v454
    %v564 = vmul.f32 %v349, %v458
    %v565 = vmul.f32 %v351, %v462
    %v566 = vmul.f32 %v353, %v466
    %v567 = vmul.f32 %v355, %v470
    %v568 = vmul.f32 %v357, %v474
    %v569 = vmul.f32 %v359, %v478
    %v570 = vmul.f32 %v361, %v482
    %v571 = vmul.f32 %v363, %v486
    %v572 = vmul.f32 %v365, %v490
    %v573 = vmul.f32 %v367, %v494
    %v574 = vmul.f32 %v369, %v498
    %v575 = vmul.f32 %v371, %v502
    %v576 = vmul.f32 %v373, %v506
    %v577 = vmul.f32 %v375, %v510
    %v578 = vmul.f32 %v377, %v514
    %611 = vset.pattern.permute.xlu0 0
    %612 = vperm.xlu0 %611, %v547
    %v613 = vpop.permute.xlu0 %612
    %614 = vset.pattern.permute.xlu0 0
    %615 = vperm.xlu0 %614, %v548
    %v616 = vpop.permute.xlu0 %615
    %617 = vset.pattern.permute.xlu0 0
    %618 = vperm.xlu0 %617, %v549
    %v619 = vpop.permute.xlu0 %618
    %620 = vset.pattern.permute.xlu0 0
    %621 = vperm.xlu0 %620, %v550
    %v622 = vpop.permute.xlu0 %621
    %623 = vset.pattern.permute.xlu0 0
    %624 = vperm.xlu0 %623, %v551
    %v625 = vpop.permute.xlu0 %624
    %626 = vset.pattern.permute.xlu0 0
    %627 = vperm.xlu0 %626, %v552
    %v628 = vpop.permute.xlu0 %627
    %629 = vset.pattern.permute.xlu0 0
    %630 = vperm.xlu0 %629, %v553
    %v631 = vpop.permute.xlu0 %630
    %632 = vset.pattern.permute.xlu0 0
    %633 = vperm.xlu0 %632, %v554
    %v634 = vpop.permute.xlu0 %633
    %635 = vset.pattern.permute.xlu0 0
    %636 = vperm.xlu0 %635, %v555
    %v637 = vpop.permute.xlu0 %636
    %638 = vset.pattern.permute.xlu0 0
    %639 = vperm.xlu0 %638, %v556
    %v640 = vpop.permute.xlu0 %639
    %641 = vset.pattern.permute.xlu0 0
    %642 = vperm.xlu0 %641, %v557
    %v643 = vpop.permute.xlu0 %642
    %644 = vset.pattern.permute.xlu0 0
    %645 = vperm.xlu0 %644, %v558
    %v646 = vpop.permute.xlu0 %645
    %647 = vset.pattern.permute.xlu0 0
    %648 = vperm.xlu0 %647, %v559
    %v649 = vpop.permute.xlu0 %648
    %650 = vset.pattern.permute.xlu0 0
    %651 = vperm.xlu0 %650, %v560
    %v652 = vpop.permute.xlu0 %651
    %653 = vset.pattern.permute.xlu0 0
    %654 = vperm.xlu0 %653, %v561
    %v655 = vpop.permute.xlu0 %654
    %656 = vset.pattern.permute.xlu0 0
    %657 = vperm.xlu0 %656, %v562
    %v658 = vpop.permute.xlu0 %657
    %659 = vset.pattern.permute.xlu0 0
    %660 = vperm.xlu0 %659, %v563
    %v661 = vpop.permute.xlu0 %660
    %662 = vset.pattern.permute.xlu0 0
    %663 = vperm.xlu0 %662, %v564
    %v664 = vpop.permute.xlu0 %663
    %665 = vset.pattern.permute.xlu0 0
    %666 = vperm.xlu0 %665, %v565
    %v667 = vpop.permute.xlu0 %666
    %668 = vset.pattern.permute.xlu0 0
    %669 = vperm.xlu0 %668, %v566
    %v670 = vpop.permute.xlu0 %669
    %671 = vset.pattern.permute.xlu0 0
    %672 = vperm.xlu0 %671, %v567
    %v673 = vpop.permute.xlu0 %672
    %674 = vset.pattern.permute.xlu0 0
    %675 = vperm.xlu0 %674, %v568
    %v676 = vpop.permute.xlu0 %675
    %677 = vset.pattern.permute.xlu0 0
    %678 = vperm.xlu0 %677, %v569
    %v679 = vpop.permute.xlu0 %678
    %680 = vset.pattern.permute.xlu0 0
    %681 = vperm.xlu0 %680, %v570
    %v682 = vpop.permute.xlu0 %681
    %683 = vset.pattern.permute.xlu0 0
    %684 = vperm.xlu0 %683, %v571
    %v685 = vpop.permute.xlu0 %684
    %686 = vset.pattern.permute.xlu0 0
    %687 = vperm.xlu0 %686, %v572
    %v688 = vpop.permute.xlu0 %687
    %689 = vset.pattern.permute.xlu0 0
    %690 = vperm.xlu0 %689, %v573
    %v691 = vpop.permute.xlu0 %690
    %692 = vset.pattern.permute.xlu0 0
    %693 = vperm.xlu0 %692, %v574
    %v694 = vpop.permute.xlu0 %693
    %695 = vset.pattern.permute.xlu0 0
    %696 = vperm.xlu0 %695, %v575
    %v697 = vpop.permute.xlu0 %696
    %698 = vset.pattern.permute.xlu0 0
    %699 = vperm.xlu0 %698, %v576
    %v700 = vpop.permute.xlu0 %699
    %701 = vset.pattern.permute.xlu0 0
    %702 = vperm.xlu0 %701, %v577
    %v703 = vpop.permute.xlu0 %702
    %704 = vset.pattern.permute.xlu0 0
    %705 = vperm.xlu0 %704, %v578
    %v706 = vpop.permute.xlu0 %705
    %v707 = vlaneseq
    %v708 = vshrl.u32 %v707, 7
    %v709 = vsub.s32 %v299, %v708
    %v710 = vrot.slane %v613, %v709
    %v711 = vadd.s32 %v299, 4294967288
    %v712 = vlaneseq
    %v713 = vshrl.u32 %v712, 7
    %v714 = vsub.s32 %v711, %v713
    %v715 = vrot.slane %v616, %v714
    %vm716 = vcmask 130112
    %v717 = vsel %vm716, %v715, %v710
    %v718 = vadd.s32 %v299, 4294967280
    %v719 = vlaneseq
    %v720 = vshrl.u32 %v719, 7
    %v721 = vsub.s32 %v718, %v720
    %v722 = vrot.slane %v619, %v721
    %vm723 = vcmask 195712
    %v724 = vsel %vm723, %v722, %v717
    %v725 = vadd.s32 %v299, 4294967272
    %v726 = vlaneseq
    %v727 = vshrl.u32 %v726, 7
    %v728 = vsub.s32 %v725, %v727
    %v729 = vrot.slane %v622, %v728
    %vm730 = vcmask 261312
    %v731 = vsel %vm730, %v729, %v724
    %v732 = vadd.s32 %v299, 4294967264
    %v733 = vlaneseq
    %v734 = vshrl.u32 %v733, 7
    %v735 = vsub.s32 %v732, %v734
    %v736 = vrot.slane %v625, %v735
    %vm737 = vcmask 326912
    %v738 = vsel %vm737, %v736, %v731
    %v739 = vadd.s32 %v299, 4294967256
    %v740 = vlaneseq
    %v741 = vshrl.u32 %v740, 7
    %v742 = vsub.s32 %v739, %v741
    %v743 = vrot.slane %v628, %v742
    %vm744 = vcmask 392512
    %v745 = vsel %vm744, %v743, %v738
    %v746 = vadd.s32 %v299, 4294967248
    %v747 = vlaneseq
    %v748 = vshrl.u32 %v747, 7
    %v749 = vsub.s32 %v746, %v748
    %v750 = vrot.slane %v631, %v749
    %vm751 = vcmask 458112
    %v752 = vsel %vm751, %v750, %v745
    %v753 = vadd.s32 %v299, 4294967240
    %v754 = vlaneseq
    %v755 = vshrl.u32 %v754, 7
    %v756 = vsub.s32 %v753, %v755
    %v757 = vrot.slane %v634, %v756
    %vm758 = vcmask 523712
    %v759 = vsel %vm758, %v757, %v752
    %v760 = vadd.s32 %v299, 4294967232
    %v761 = vlaneseq
    %v762 = vshrl.u32 %v761, 7
    %v763 = vsub.s32 %v760, %v762
    %v764 = vrot.slane %v637, %v763
    %vm765 = vcmask 589312
    %v766 = vsel %vm765, %v764, %v759
    %v767 = vadd.s32 %v299, 4294967224
    %v768 = vlaneseq
    %v769 = vshrl.u32 %v768, 7
    %v770 = vsub.s32 %v767, %v769
    %v771 = vrot.slane %v640, %v770
    %vm772 = vcmask 654912
    %v773 = vsel %vm772, %v771, %v766
    %v774 = vadd.s32 %v299, 4294967216
    %v775 = vlaneseq
    %v776 = vshrl.u32 %v775, 7
    %v777 = vsub.s32 %v774, %v776
    %v778 = vrot.slane %v643, %v777
    %vm779 = vcmask 720512
    %v780 = vsel %vm779, %v778, %v773
    %v781 = vadd.s32 %v299, 4294967208
    %v782 = vlaneseq
    %v783 = vshrl.u32 %v782, 7
    %v784 = vsub.s32 %v781, %v783
    %v785 = vrot.slane %v646, %v784
    %vm786 = vcmask 786112
    %v787 = vsel %vm786, %v785, %v780
    %v788 = vadd.s32 %v299, 4294967200
    %v789 = vlaneseq
    %v790 = vshrl.u32 %v789, 7
    %v791 = vsub.s32 %v788, %v790
    %v792 = vrot.slane %v649, %v791
    %vm793 = vcmask 851712
    %v794 = vsel %vm793, %v792, %v787
    %v795 = vadd.s32 %v299, 4294967192
    %v796 = vlaneseq
    %v797 = vshrl.u32 %v796, 7
    %v798 = vsub.s32 %v795, %v797
    %v799 = vrot.slane %v652, %v798
    %vm800 = vcmask 917312
    %v801 = vsel %vm800, %v799, %v794
    %v802 = vadd.s32 %v299, 4294967184
    %v803 = vlaneseq
    %v804 = vshrl.u32 %v803, 7
    %v805 = vsub.s32 %v802, %v804
    %v806 = vrot.slane %v655, %v805
    %vm807 = vcmask 982912
    %v808 = vsel %vm807, %v806, %v801
    %v809 = vadd.s32 %v299, 4294967176
    %v810 = vlaneseq
    %v811 = vshrl.u32 %v810, 7
    %v812 = vsub.s32 %v809, %v811
    %v813 = vrot.slane %v658, %v812
    %vm814 = vcmask 1048512
    %v815 = vsel %vm814, %v813, %v808
    %v816 = vlaneseq
    %v817 = vshrl.u32 %v816, 7
    %v818 = vsub.s32 %v299, %v817
    %v819 = vrot.slane %v661, %v818
    %v820 = vlaneseq
    %v821 = vshrl.u32 %v820, 7
    %v822 = vsub.s32 %v711, %v821
    %v823 = vrot.slane %v664, %v822
    %v824 = vsel %vm716, %v823, %v819
    %v825 = vlaneseq
    %v826 = vshrl.u32 %v825, 7
    %v827 = vsub.s32 %v718, %v826
    %v828 = vrot.slane %v667, %v827
    %v829 = vsel %vm723, %v828, %v824
    %v830 = vlaneseq
    %v831 = vshrl.u32 %v830, 7
    %v832 = vsub.s32 %v725, %v831
    %v833 = vrot.slane %v670, %v832
    %v834 = vsel %vm730, %v833, %v829
    %v835 = vlaneseq
    %v836 = vshrl.u32 %v835, 7
    %v837 = vsub.s32 %v732, %v836
    %v838 = vrot.slane %v673, %v837
    %v839 = vsel %vm737, %v838, %v834
    %v840 = vlaneseq
    %v841 = vshrl.u32 %v840, 7
    %v842 = vsub.s32 %v739, %v841
    %v843 = vrot.slane %v676, %v842
    %v844 = vsel %vm744, %v843, %v839
    %v845 = vlaneseq
    %v846 = vshrl.u32 %v845, 7
    %v847 = vsub.s32 %v746, %v846
    %v848 = vrot.slane %v679, %v847
    %v849 = vsel %vm751, %v848, %v844
    %v850 = vlaneseq
    %v851 = vshrl.u32 %v850, 7
    %v852 = vsub.s32 %v753, %v851
    %v853 = vrot.slane %v682, %v852
    %v854 = vsel %vm758, %v853, %v849
    %v855 = vlaneseq
    %v856 = vshrl.u32 %v855, 7
    %v857 = vsub.s32 %v760, %v856
    %v858 = vrot.slane %v685, %v857
    %v859 = vsel %vm765, %v858, %v854
    %v860 = vlaneseq
    %v861 = vshrl.u32 %v860, 7
    %v862 = vsub.s32 %v767, %v861
    %v863 = vrot.slane %v688, %v862
    %v864 = vsel %vm772, %v863, %v859
    %v865 = vlaneseq
    %v866 = vshrl.u32 %v865, 7
    %v867 = vsub.s32 %v774, %v866
    %v868 = vrot.slane %v691, %v867
    %v869 = vsel %vm779, %v868, %v864
    %v870 = vlaneseq
    %v871 = vshrl.u32 %v870, 7
    %v872 = vsub.s32 %v781, %v871
    %v873 = vrot.slane %v694, %v872
    %v874 = vsel %vm786, %v873, %v869
    %v875 = vlaneseq
    %v876 = vshrl.u32 %v875, 7
    %v877 = vsub.s32 %v788, %v876
    %v878 = vrot.slane %v697, %v877
    %v879 = vsel %vm793, %v878, %v874
    %v880 = vlaneseq
    %v881 = vshrl.u32 %v880, 7
    %v882 = vsub.s32 %v795, %v881
    %v883 = vrot.slane %v700, %v882
    %v884 = vsel %vm800, %v883, %v879
    %v885 = vlaneseq
    %v886 = vshrl.u32 %v885, 7
    %v887 = vsub.s32 %v802, %v886
    %v888 = vrot.slane %v703, %v887
    %v889 = vsel %vm807, %v888, %v884
    %v890 = vlaneseq
    %v891 = vshrl.u32 %v890, 7
    %v892 = vsub.s32 %v809, %v891
    %v893 = vrot.slane %v706, %v892
    %v894 = vsel %vm814, %v893, %v889
    %vm895 = vcmask 1041409
    %v896 = vsel %vm895, %v894, %v815
    %vm898 = vcmask 1041408
    %v899 = vsel %vm898, %v896, 0.0
    %900 = vadd.xlane.f32.xlu0 %v899
    %v901 = vpop.xlane.xlu0 %900
    %v902 = vrcp.pop %v901
    %v904 = vlaneseq
    %v905 = vshrl.u32 %v904, 7
    %v906 = vsub.s32 0, %v905
    %v907 = vrot.slane %v902, %v906
    %v908 = vlaneseq
    %v909 = vshrl.u32 %v908, 7
    %v910 = vsub.s32 1, %v909
    %v911 = vrot.slane %v902, %v910
    %v914 = vmul.f32 %v547, %v907
    %v915 = vmul.f32 %v548, %v907
    %v916 = vmul.f32 %v549, %v907
    %v917 = vmul.f32 %v550, %v907
    %v918 = vmul.f32 %v551, %v907
    %v919 = vmul.f32 %v552, %v907
    %v920 = vmul.f32 %v553, %v907
    %v921 = vmul.f32 %v554, %v907
    %v922 = vmul.f32 %v555, %v907
    %v923 = vmul.f32 %v556, %v907
    %v924 = vmul.f32 %v557, %v907
    %v925 = vmul.f32 %v558, %v907
    %v926 = vmul.f32 %v559, %v907
    %v927 = vmul.f32 %v560, %v907
    %v928 = vmul.f32 %v561, %v907
    %v929 = vmul.f32 %v562, %v907
    %v930 = vmul.f32 %v563, %v911
    %v931 = vmul.f32 %v564, %v911
    %v932 = vmul.f32 %v565, %v911
    %v933 = vmul.f32 %v566, %v911
    %v934 = vmul.f32 %v567, %v911
    %v935 = vmul.f32 %v568, %v911
    %v936 = vmul.f32 %v569, %v911
    %v937 = vmul.f32 %v570, %v911
    %v938 = vmul.f32 %v571, %v911
    %v939 = vmul.f32 %v572, %v911
    %v940 = vmul.f32 %v573, %v911
    %v941 = vmul.f32 %v574, %v911
    %v942 = vmul.f32 %v575, %v911
    %v943 = vmul.f32 %v576, %v911
    %v944 = vmul.f32 %v577, %v911
    %v945 = vmul.f32 %v578, %v911
    %978 = vset.pattern.permute.xlu0 0
    %979 = vperm.xlu0 %978, %v914
    %v980 = vpop.permute.xlu0 %979
    %981 = vset.pattern.permute.xlu0 0
    %982 = vperm.xlu0 %981, %v915
    %v983 = vpop.permute.xlu0 %982
    %984 = vset.pattern.permute.xlu0 0
    %985 = vperm.xlu0 %984, %v916
    %v986 = vpop.permute.xlu0 %985
    %987 = vset.pattern.permute.xlu0 0
    %988 = vperm.xlu0 %987, %v917
    %v989 = vpop.permute.xlu0 %988
    %990 = vset.pattern.permute.xlu0 0
    %991 = vperm.xlu0 %990, %v918
    %v992 = vpop.permute.xlu0 %991
    %993 = vset.pattern.permute.xlu0 0
    %994 = vperm.xlu0 %993, %v919
    %v995 = vpop.permute.xlu0 %994
    %996 = vset.pattern.permute.xlu0 0
    %997 = vperm.xlu0 %996, %v920
    %v998 = vpop.permute.xlu0 %997
    %999 = vset.pattern.permute.xlu0 0
    %1000 = vperm.xlu0 %999, %v921
    %v1001 = vpop.permute.xlu0 %1000
    %1002 = vset.pattern.permute.xlu0 0
    %1003 = vperm.xlu0 %1002, %v922
    %v1004 = vpop.permute.xlu0 %1003
    %1005 = vset.pattern.permute.xlu0 0
    %1006 = vperm.xlu0 %1005, %v923
    %v1007 = vpop.permute.xlu0 %1006
    %1008 = vset.pattern.permute.xlu0 0
    %1009 = vperm.xlu0 %1008, %v924
    %v1010 = vpop.permute.xlu0 %1009
    %1011 = vset.pattern.permute.xlu0 0
    %1012 = vperm.xlu0 %1011, %v925
    %v1013 = vpop.permute.xlu0 %1012
    %1014 = vset.pattern.permute.xlu0 0
    %1015 = vperm.xlu0 %1014, %v926
    %v1016 = vpop.permute.xlu0 %1015
    %1017 = vset.pattern.permute.xlu0 0
    %1018 = vperm.xlu0 %1017, %v927
    %v1019 = vpop.permute.xlu0 %1018
    %1020 = vset.pattern.permute.xlu0 0
    %1021 = vperm.xlu0 %1020, %v928
    %v1022 = vpop.permute.xlu0 %1021
    %1023 = vset.pattern.permute.xlu0 0
    %1024 = vperm.xlu0 %1023, %v929
    %v1025 = vpop.permute.xlu0 %1024
    %1026 = vset.pattern.permute.xlu0 0
    %1027 = vperm.xlu0 %1026, %v930
    %v1028 = vpop.permute.xlu0 %1027
    %1029 = vset.pattern.permute.xlu0 0
    %1030 = vperm.xlu0 %1029, %v931
    %v1031 = vpop.permute.xlu0 %1030
    %1032 = vset.pattern.permute.xlu0 0
    %1033 = vperm.xlu0 %1032, %v932
    %v1034 = vpop.permute.xlu0 %1033
    %1035 = vset.pattern.permute.xlu0 0
    %1036 = vperm.xlu0 %1035, %v933
    %v1037 = vpop.permute.xlu0 %1036
    %1038 = vset.pattern.permute.xlu0 0
    %1039 = vperm.xlu0 %1038, %v934
    %v1040 = vpop.permute.xlu0 %1039
    %1041 = vset.pattern.permute.xlu0 0
    %1042 = vperm.xlu0 %1041, %v935
    %v1043 = vpop.permute.xlu0 %1042
    %1044 = vset.pattern.permute.xlu0 0
    %1045 = vperm.xlu0 %1044, %v936
    %v1046 = vpop.permute.xlu0 %1045
    %1047 = vset.pattern.permute.xlu0 0
    %1048 = vperm.xlu0 %1047, %v937
    %v1049 = vpop.permute.xlu0 %1048
    %1050 = vset.pattern.permute.xlu0 0
    %1051 = vperm.xlu0 %1050, %v938
    %v1052 = vpop.permute.xlu0 %1051
    %1053 = vset.pattern.permute.xlu0 0
    %1054 = vperm.xlu0 %1053, %v939
    %v1055 = vpop.permute.xlu0 %1054
    %1056 = vset.pattern.permute.xlu0 0
    %1057 = vperm.xlu0 %1056, %v940
    %v1058 = vpop.permute.xlu0 %1057
    %1059 = vset.pattern.permute.xlu0 0
    %1060 = vperm.xlu0 %1059, %v941
    %v1061 = vpop.permute.xlu0 %1060
    %1062 = vset.pattern.permute.xlu0 0
    %1063 = vperm.xlu0 %1062, %v942
    %v1064 = vpop.permute.xlu0 %1063
    %1065 = vset.pattern.permute.xlu0 0
    %1066 = vperm.xlu0 %1065, %v943
    %v1067 = vpop.permute.xlu0 %1066
    %1068 = vset.pattern.permute.xlu0 0
    %1069 = vperm.xlu0 %1068, %v944
    %v1070 = vpop.permute.xlu0 %1069
    %1071 = vset.pattern.permute.xlu0 0
    %1072 = vperm.xlu0 %1071, %v945
    %v1073 = vpop.permute.xlu0 %1072
    %v1074 = vlaneseq
    %v1075 = vshrl.u32 %v1074, 7
    %v1076 = vsub.s32 %v299, %v1075
    %v1077 = vrot.slane %v980, %v1076
    %v1078 = vlaneseq
    %v1079 = vshrl.u32 %v1078, 7
    %v1080 = vsub.s32 %v711, %v1079
    %v1081 = vrot.slane %v983, %v1080
    %v1082 = vsel %vm716, %v1081, %v1077
    %v1083 = vlaneseq
    %v1084 = vshrl.u32 %v1083, 7
    %v1085 = vsub.s32 %v718, %v1084
    %v1086 = vrot.slane %v986, %v1085
    %v1087 = vsel %vm723, %v1086, %v1082
    %v1088 = vlaneseq
    %v1089 = vshrl.u32 %v1088, 7
    %v1090 = vsub.s32 %v725, %v1089
    %v1091 = vrot.slane %v989, %v1090
    %v1092 = vsel %vm730, %v1091, %v1087
    %v1093 = vlaneseq
    %v1094 = vshrl.u32 %v1093, 7
    %v1095 = vsub.s32 %v732, %v1094
    %v1096 = vrot.slane %v992, %v1095
    %v1097 = vsel %vm737, %v1096, %v1092
    %v1098 = vlaneseq
    %v1099 = vshrl.u32 %v1098, 7
    %v1100 = vsub.s32 %v739, %v1099
    %v1101 = vrot.slane %v995, %v1100
    %v1102 = vsel %vm744, %v1101, %v1097
    %v1103 = vlaneseq
    %v1104 = vshrl.u32 %v1103, 7
    %v1105 = vsub.s32 %v746, %v1104
    %v1106 = vrot.slane %v998, %v1105
    %v1107 = vsel %vm751, %v1106, %v1102
    %v1108 = vlaneseq
    %v1109 = vshrl.u32 %v1108, 7
    %v1110 = vsub.s32 %v753, %v1109
    %v1111 = vrot.slane %v1001, %v1110
    %v1112 = vsel %vm758, %v1111, %v1107
    %v1113 = vlaneseq
    %v1114 = vshrl.u32 %v1113, 7
    %v1115 = vsub.s32 %v760, %v1114
    %v1116 = vrot.slane %v1004, %v1115
    %v1117 = vsel %vm765, %v1116, %v1112
    %v1118 = vlaneseq
    %v1119 = vshrl.u32 %v1118, 7
    %v1120 = vsub.s32 %v767, %v1119
    %v1121 = vrot.slane %v1007, %v1120
    %v1122 = vsel %vm772, %v1121, %v1117
    %v1123 = vlaneseq
    %v1124 = vshrl.u32 %v1123, 7
    %v1125 = vsub.s32 %v774, %v1124
    %v1126 = vrot.slane %v1010, %v1125
    %v1127 = vsel %vm779, %v1126, %v1122
    %v1128 = vlaneseq
    %v1129 = vshrl.u32 %v1128, 7
    %v1130 = vsub.s32 %v781, %v1129
    %v1131 = vrot.slane %v1013, %v1130
    %v1132 = vsel %vm786, %v1131, %v1127
    %v1133 = vlaneseq
    %v1134 = vshrl.u32 %v1133, 7
    %v1135 = vsub.s32 %v788, %v1134
    %v1136 = vrot.slane %v1016, %v1135
    %v1137 = vsel %vm793, %v1136, %v1132
    %v1138 = vlaneseq
    %v1139 = vshrl.u32 %v1138, 7
    %v1140 = vsub.s32 %v795, %v1139
    %v1141 = vrot.slane %v1019, %v1140
    %v1142 = vsel %vm800, %v1141, %v1137
    %v1143 = vlaneseq
    %v1144 = vshrl.u32 %v1143, 7
    %v1145 = vsub.s32 %v802, %v1144
    %v1146 = vrot.slane %v1022, %v1145
    %v1147 = vsel %vm807, %v1146, %v1142
    %v1148 = vlaneseq
    %v1149 = vshrl.u32 %v1148, 7
    %v1150 = vsub.s32 %v809, %v1149
    %v1151 = vrot.slane %v1025, %v1150
    %v1152 = vsel %vm814, %v1151, %v1147
    %v1153 = vlaneseq
    %v1154 = vshrl.u32 %v1153, 7
    %v1155 = vsub.s32 %v299, %v1154
    %v1156 = vrot.slane %v1028, %v1155
    %v1157 = vlaneseq
    %v1158 = vshrl.u32 %v1157, 7
    %v1159 = vsub.s32 %v711, %v1158
    %v1160 = vrot.slane %v1031, %v1159
    %v1161 = vsel %vm716, %v1160, %v1156
    %v1162 = vlaneseq
    %v1163 = vshrl.u32 %v1162, 7
    %v1164 = vsub.s32 %v718, %v1163
    %v1165 = vrot.slane %v1034, %v1164
    %v1166 = vsel %vm723, %v1165, %v1161
    %v1167 = vlaneseq
    %v1168 = vshrl.u32 %v1167, 7
    %v1169 = vsub.s32 %v725, %v1168
    %v1170 = vrot.slane %v1037, %v1169
    %v1171 = vsel %vm730, %v1170, %v1166
    %v1172 = vlaneseq
    %v1173 = vshrl.u32 %v1172, 7
    %v1174 = vsub.s32 %v732, %v1173
    %v1175 = vrot.slane %v1040, %v1174
    %v1176 = vsel %vm737, %v1175, %v1171
    %v1177 = vlaneseq
    %v1178 = vshrl.u32 %v1177, 7
    %v1179 = vsub.s32 %v739, %v1178
    %v1180 = vrot.slane %v1043, %v1179
    %v1181 = vsel %vm744, %v1180, %v1176
    %v1182 = vlaneseq
    %v1183 = vshrl.u32 %v1182, 7
    %v1184 = vsub.s32 %v746, %v1183
    %v1185 = vrot.slane %v1046, %v1184
    %v1186 = vsel %vm751, %v1185, %v1181
    %v1187 = vlaneseq
    %v1188 = vshrl.u32 %v1187, 7
    %v1189 = vsub.s32 %v753, %v1188
    %v1190 = vrot.slane %v1049, %v1189
    %v1191 = vsel %vm758, %v1190, %v1186
    %v1192 = vlaneseq
    %v1193 = vshrl.u32 %v1192, 7
    %v1194 = vsub.s32 %v760, %v1193
    %v1195 = vrot.slane %v1052, %v1194
    %v1196 = vsel %vm765, %v1195, %v1191
    %v1197 = vlaneseq
    %v1198 = vshrl.u32 %v1197, 7
    %v1199 = vsub.s32 %v767, %v1198
    %v1200 = vrot.slane %v1055, %v1199
    %v1201 = vsel %vm772, %v1200, %v1196
    %v1202 = vlaneseq
    %v1203 = vshrl.u32 %v1202, 7
    %v1204 = vsub.s32 %v774, %v1203
    %v1205 = vrot.slane %v1058, %v1204
    %v1206 = vsel %vm779, %v1205, %v1201
    %v1207 = vlaneseq
    %v1208 = vshrl.u32 %v1207, 7
    %v1209 = vsub.s32 %v781, %v1208
    %v1210 = vrot.slane %v1061, %v1209
    %v1211 = vsel %vm786, %v1210, %v1206
    %v1212 = vlaneseq
    %v1213 = vshrl.u32 %v1212, 7
    %v1214 = vsub.s32 %v788, %v1213
    %v1215 = vrot.slane %v1064, %v1214
    %v1216 = vsel %vm793, %v1215, %v1211
    %v1217 = vlaneseq
    %v1218 = vshrl.u32 %v1217, 7
    %v1219 = vsub.s32 %v795, %v1218
    %v1220 = vrot.slane %v1067, %v1219
    %v1221 = vsel %vm800, %v1220, %v1216
    %v1222 = vlaneseq
    %v1223 = vshrl.u32 %v1222, 7
    %v1224 = vsub.s32 %v802, %v1223
    %v1225 = vrot.slane %v1070, %v1224
    %v1226 = vsel %vm807, %v1225, %v1221
    %v1227 = vlaneseq
    %v1228 = vshrl.u32 %v1227, 7
    %v1229 = vsub.s32 %v809, %v1228
    %v1230 = vrot.slane %v1073, %v1229
    %v1231 = vsel %vm814, %v1230, %v1226
    %v1232 = vsel %vm895, %v1231, %v1152
    %1234 = vst [vmem:[#allocation6] sm:$0x3] %v1232
    %v1267 = vmul.f32 %v62, %v980
    %v1268 = vmul.f32 %v63, %v983
    %v1269 = vmul.f32 %v64, %v986
    %v1270 = vmul.f32 %v65, %v989
    %v1271 = vmul.f32 %v66, %v992
    %v1272 = vmul.f32 %v67, %v995
    %v1273 = vmul.f32 %v68, %v998
    %v1274 = vmul.f32 %v69, %v1001
    %v1275 = vmul.f32 %v70, %v1004
    %v1276 = vmul.f32 %v71, %v1007
    %v1277 = vmul.f32 %v72, %v1010
    %v1278 = vmul.f32 %v73, %v1013
    %v1279 = vmul.f32 %v74, %v1016
    %v1280 = vmul.f32 %v75, %v1019
    %v1281 = vmul.f32 %v76, %v1022
    %v1282 = vmul.f32 %v77, %v1025
    %v1283 = vmul.f32 %v78, %v1028
    %v1284 = vmul.f32 %v79, %v1031
    %v1285 = vmul.f32 %v80, %v1034
    %v1286 = vmul.f32 %v81, %v1037
    %v1287 = vmul.f32 %v82, %v1040
    %v1288 = vmul.f32 %v83, %v1043
    %v1289 = vmul.f32 %v84, %v1046
    %v1290 = vmul.f32 %v85, %v1049
    %v1291 = vmul.f32 %v86, %v1052
    %v1292 = vmul.f32 %v87, %v1055
    %v1293 = vmul.f32 %v88, %v1058
    %v1294 = vmul.f32 %v89, %v1061
    %v1295 = vmul.f32 %v90, %v1064
    %v1296 = vmul.f32 %v91, %v1067
    %v1297 = vmul.f32 %v92, %v1070
    %v1298 = vmul.f32 %v93, %v1073
    %1299 = vst [vmem:[#allocation8] sm:$0xff] %v1267
    %1300 = vst [vmem:[#allocation8 + $0x8] sm:$0xff] %v1268
    %1301 = vst [vmem:[#allocation8 + $0x10] sm:$0xff] %v1269
    %1302 = vst [vmem:[#allocation8 + $0x18] sm:$0xff] %v1270
    %1303 = vst [vmem:[#allocation8 + $0x20] sm:$0xff] %v1271
    %1304 = vst [vmem:[#allocation8 + $0x28] sm:$0xff] %v1272
    %1305 = vst [vmem:[#allocation8 + $0x30] sm:$0xff] %v1273
    %1306 = vst [vmem:[#allocation8 + $0x38] sm:$0xff] %v1274
    %1307 = vst [vmem:[#allocation8 + $0x40] sm:$0xff] %v1275
    %1308 = vst [vmem:[#allocation8 + $0x48] sm:$0xff] %v1276
    %1309 = vst [vmem:[#allocation8 + $0x50] sm:$0xff] %v1277
    %1310 = vst [vmem:[#allocation8 + $0x58] sm:$0xff] %v1278
    %1311 = vst [vmem:[#allocation8 + $0x60] sm:$0xff] %v1279
    %1312 = vst [vmem:[#allocation8 + $0x68] sm:$0xff] %v1280
    %1313 = vst [vmem:[#allocation8 + $0x70] sm:$0xff] %v1281
    %1314 = vst [vmem:[#allocation8 + $0x78] sm:$0xff] %v1282
    %1315 = vst [vmem:[#allocation8 + $0x80] sm:$0xff] %v1283
    %1316 = vst [vmem:[#allocation8 + $0x88] sm:$0xff] %v1284
    %1317 = vst [vmem:[#allocation8 + $0x90] sm:$0xff] %v1285
    %1318 = vst [vmem:[#allocation8 + $0x98] sm:$0xff] %v1286
    %1319 = vst [vmem:[#allocation8 + $0xa0] sm:$0xff] %v1287
    %1320 = vst [vmem:[#allocation8 + $0xa8] sm:$0xff] %v1288
    %1321 = vst [vmem:[#allocation8 + $0xb0] sm:$0xff] %v1289
    %1322 = vst [vmem:[#allocation8 + $0xb8] sm:$0xff] %v1290
    %1323 = vst [vmem:[#allocation8 + $0xc0] sm:$0xff] %v1291
    %1324 = vst [vmem:[#allocation8 + $0xc8] sm:$0xff] %v1292
    %1325 = vst [vmem:[#allocation8 + $0xd0] sm:$0xff] %v1293
    %1326 = vst [vmem:[#allocation8 + $0xd8] sm:$0xff] %v1294
    %1327 = vst [vmem:[#allocation8 + $0xe0] sm:$0xff] %v1295
    %1328 = vst [vmem:[#allocation8 + $0xe8] sm:$0xff] %v1296
    %1329 = vst [vmem:[#allocation8 + $0xf0] sm:$0xff] %v1297
    %1330 = vst [vmem:[#allocation8 + $0xf8] sm:$0xff] %v1298
    %v1331 = vadd.f32 %v1267, %v1268
    %v1332 = vadd.f32 %v1331, %v1269
    %v1333 = vadd.f32 %v1332, %v1270
    %v1334 = vadd.f32 %v1333, %v1271
    %v1335 = vadd.f32 %v1334, %v1272
    %v1336 = vadd.f32 %v1335, %v1273
    %v1337 = vadd.f32 %v1336, %v1274
    %v1338 = vadd.f32 %v1337, %v1275
    %v1339 = vadd.f32 %v1338, %v1276
    %v1340 = vadd.f32 %v1339, %v1277
    %v1341 = vadd.f32 %v1340, %v1278
    %v1342 = vadd.f32 %v1341, %v1279
    %v1343 = vadd.f32 %v1342, %v1280
    %v1344 = vadd.f32 %v1343, %v1281
    %v1345 = vadd.f32 %v1344, %v1282
    %v1346 = vrot.slane %v1345, 4
    %v1347 = vadd.f32 %v1345, %v1346
    %v1348 = vrot.slane %v1347, 2
    %v1349 = vadd.f32 %v1347, %v1348
    %v1350 = vrot.slane %v1349, 1
    %v1351 = vadd.f32 %v1349, %v1350
    %v1352 = vadd.f32 %v1283, %v1284
    %v1353 = vadd.f32 %v1352, %v1285
    %v1354 = vadd.f32 %v1353, %v1286
    %v1355 = vadd.f32 %v1354, %v1287
    %v1356 = vadd.f32 %v1355, %v1288
    %v1357 = vadd.f32 %v1356, %v1289
    %v1358 = vadd.f32 %v1357, %v1290
    %v1359 = vadd.f32 %v1358, %v1291
    %v1360 = vadd.f32 %v1359, %v1292
    %v1361 = vadd.f32 %v1360, %v1293
    %v1362 = vadd.f32 %v1361, %v1294
    %v1363 = vadd.f32 %v1362, %v1295
    %v1364 = vadd.f32 %v1363, %v1296
    %v1365 = vadd.f32 %v1364, %v1297
    %v1366 = vadd.f32 %v1365, %v1298
    %v1367 = vrot.slane %v1366, 4
    %v1368 = vadd.f32 %v1366, %v1367
    %v1369 = vrot.slane %v1368, 2
    %v1370 = vadd.f32 %v1368, %v1369
    %v1371 = vrot.slane %v1370, 1
    %v1372 = vadd.f32 %v1370, %v1371
    %v1375 = vsel %vm895, %v1372, %v1351
    %1377 = vst [vmem:[#allocation4] sm:$0x3] %v1375
    // Predicated region
    $region26: #{tpu_custom_call.1} parent=1 // pred_check
      _
    $region27: #{tpu_custom_call.1} parent=1 // pred_check_branch
      %1379 = sbr.rel (0) target = $region29
    $region28: #{tpu_custom_call.1} parent=1 // pred_region
      %s1381 = ssub.s32 32, 32
      %1382 = vsyncadd [#allocation5], %s1381
      %s1384 = sshll.u32 [#allocation4], 4
      %s1385 = int_to_ptr.vmem [resolvable:$true] %s1384
      %1387 = dma.vmem_to_hbm [thread:$0]  %s1385, 32, %s6, [#allocation5]
    $region29: #{tpu_custom_call.1} parent=1 // pred_fallthru
      _
    // Predicated region
    $region30: #{tpu_custom_call.1} parent=1 // pred_check
      _
    $region31: #{tpu_custom_call.1} parent=1 // pred_check_branch
      %1389 = sbr.rel (0) target = $region33
    $region32: #{tpu_custom_call.1} parent=1 // pred_region
      %s1391 = ssub.s32 32, 32
      %1392 = vsyncadd [#allocation7], %s1391
      %s1394 = sshll.u32 [#allocation6], 4
      %s1395 = int_to_ptr.vmem [resolvable:$true] %s1394
      %1397 = dma.vmem_to_hbm [thread:$0]  %s1395, 32, %s7, [#allocation7]
    $region33: #{tpu_custom_call.1} parent=1 // pred_fallthru
      _
    // Predicated region
    $region34: #{tpu_custom_call.1} parent=1 // pred_check
      _
    $region35: #{tpu_custom_call.1} parent=1 // pred_check_branch
      %1399 = sbr.rel (0) target = $region37
    $region36: #{tpu_custom_call.1} parent=1 // pred_region
      %s1401 = ssub.s32 4096, 4096
      %1402 = vsyncadd [#allocation7], %s1401
      %s1403 = sshll.u32 [#allocation8], 4
      %s1404 = int_to_ptr.vmem [resolvable:$true] %s1403
      %1409 = dma.vmem_to_hbm [thread:$0]  %s1404, 4096, %s8, [#allocation7], 128, 128, 8
    $region37: #{tpu_custom_call.1} parent=1 // pred_fallthru
      _
    // Predicated region
    $region38: #{tpu_custom_call.1} parent=1 // pred_check
      _
    $region39: #{tpu_custom_call.1} parent=1 // pred_check_branch
      %1411 = sbr.rel (0) target = $region41
    $region40: #{tpu_custom_call.1} parent=1 // pred_region
      %1412 = dma.done [#allocation5], 32
    $region41: #{tpu_custom_call.1} parent=1 // pred_fallthru
      _
    // Predicated region
    $region42: #{tpu_custom_call.1} parent=1 // pred_check
      _
    $region43: #{tpu_custom_call.1} parent=1 // pred_check_branch
      %1414 = sbr.rel (0) target = $region45
    $region44: #{tpu_custom_call.1} parent=1 // pred_region
      %1415 = dma.done [#allocation7], 32
    $region45: #{tpu_custom_call.1} parent=1 // pred_fallthru
      _
    // Predicated region
    $region46: #{tpu_custom_call.1} parent=1 // pred_check
      _
    $region47: #{tpu_custom_call.1} parent=1 // pred_check_branch
      %1417 = sbr.rel (0) target = $region49
    $region48: #{tpu_custom_call.1} parent=1 // pred_region
      %1418 = dma.done [#allocation7], 4096
    $region49: #{tpu_custom_call.1} parent=1 // pred_fallthru
      _
    %1419 = vsyncpa [#allocation5], 1
    %1420 = vsyncpa [#allocation7], 1

</llo_original>
